<compile_context>
chip_gen: v7x
topology: tpu7x:2x2x1
jax: 0.10.0
libtpu: 0.0.40
codegen_flags: <defaults>
</compile_context>

<pallas_src>
import jax
import jax.numpy as jnp
from jax.experimental import pallas as pl
from jax.experimental.pallas import tpu as pltpu


def _round_up(x, m):
    return ((x + m - 1) // m) * m


def _pad2d(a, rows, cols):
    r, c = a.shape
    if (r, c) == (rows, cols):
        return a
    return jnp.pad(a, ((0, rows - r), (0, cols - c)))


# --------------------------------------------------------------------------
# Kernel
# --------------------------------------------------------------------------
def expert_kernel(x_ref, w12_ref, b12_ref, wo_ref, bo_ref, o_ref, acc_ref):
    # grid = (token_tiles [parallel], d_ff_tiles [arbitrary / reduction])
    # x_ref   : (TM, dmp)          token tile (block index invariant across f)
    # w12_ref : (dmp, 2*TF)        fused [W1 | W2] column tile (pre-tiled slab)
    # b12_ref : (1, 2*TF) f32      fused [b1 | b2]
    # wo_ref  : (TF, dmp)          row tile of Wout (pre-tiled slab)
    # bo_ref  : (1, dmp) f32
    # acc_ref : (TM, dmp) f32      output accumulator (scratch)
    f = pl.program_id(1)

    @pl.when(f == 0)
    def _():
        acc_ref[...] = jnp.zeros_like(acc_ref)

    x = x_ref[...]
    # Single MXU pass producing x1 || x2, accumulated in f32.
    x12 = jnp.dot(x, w12_ref[...], preferred_element_type=jnp.float32)
    x12 = x12 + b12_ref[...]                      # f32 biases

    tf = w12_ref.shape[1] // 2                    # static
    x1 = x12[:, :tf]
    x2 = x12[:, tf:]

    # SiLU(x1) * x2 in f32 (sigmoid -> EUP slot).
    h = (x1 * jax.nn.sigmoid(x1)) * x2

    acc_ref[...] += jnp.dot(h.astype(wo_ref.dtype), wo_ref[...],
                            preferred_element_type=jnp.float32)

    @pl.when(f == pl.num_programs(1) - 1)
    def _():
        o_ref[...] = (acc_ref[...] + bo_ref[...]).astype(o_ref.dtype)


# --------------------------------------------------------------------------
# VMEM budgeting / tile selection
# --------------------------------------------------------------------------
def _default_vmem_limit_bytes():
    """Per-TensorCore VMEM limit with headroom, derived at trace time."""
    cap = 128 * 1024 * 1024
    try:
        kind = jax.devices()[0].device_kind.lower()
        if "v7" in kind:
            cap = 64 * 1024 * 1024            # v7x: 64 MiB per TC
    except Exception:
        pass
    try:
        info = pltpu.get_tpu_info()
        v = getattr(info, "vmem_capacity_bytes", None)
        if v:
            cap = min(cap, int(v))
    except Exception:
        pass
    return max(32 * 1024 * 1024, cap - 16 * 1024 * 1024)   # compiler headroom


def _vmem_footprint(tm, tf, dmp, in_isz, out_isz):
    dbuf = 2  # double-buffered pipeline blocks
    blocks = (tm * dmp * in_isz            # x tile
              + dmp * 2 * tf * in_isz      # fused W1|W2 tile
              + tf * dmp * in_isz          # Wout tile
              + 2 * tf * 4 + dmp * 4       # biases (f32)
              + tm * dmp * out_isz)        # output tile
    scratch = tm * dmp * 4                 # f32 accumulator
    temps = tm * 2 * tf * 4 + 2 * tm * tf * 4   # x12 / x1*sig / h f32 live values
    return dbuf * blocks + scratch + temps


def _choose_tiles(M, d_ff, dmp, in_isz, out_isz, budget, tm_pref, tf_pref):
    tf = min(_round_up(tf_pref, 128), _round_up(d_ff, 128))
    tm = min(_round_up(tm_pref, 8), _round_up(M, 8))
    # Shrink the reduction tile first (keeps tm, the weight-reuse lever).
    while _vmem_footprint(tm, tf, dmp, in_isz, out_isz) > budget and tf > 128:
        tf = _round_up(max(128, tf // 2), 128)
    while _vmem_footprint(tm, tf, dmp, in_isz, out_isz) > budget and tm > 8:
        tm = _round_up(max(8, tm // 2), 8)
    return tm, tf


# --------------------------------------------------------------------------
# Wrapper
# --------------------------------------------------------------------------
def google_expert_pallas(x, w1, b1, w2, b2, wo, bo, *,
                         tm=512, tf=512, compute_dtype=jnp.bfloat16,
                         vmem_limit_bytes=None):
    """x: [..., d_model]. Weights in [in, out] layout (== torch weight.T),
    biases [out].  compute_dtype casts matmul operands (default bf16) while
    the kernel always accumulates in f32; pass compute_dtype=None to keep the
    original operand dtype (e.g. exact f32)."""
    orig_shape = x.shape
    out_dtype = x.dtype
    d_model = orig_shape[-1]
    d_ff = w1.shape[1]

    if compute_dtype is not None:
        x = x.astype(compute_dtype)
        w1 = w1.astype(compute_dtype)
        w2 = w2.astype(compute_dtype)
        wo = wo.astype(compute_dtype)
    # Biases stay f32: they are added to f32 accumulators inside the kernel.
    b1 = b1.astype(jnp.float32)
    b2 = b2.astype(jnp.float32)
    bo = bo.astype(jnp.float32)

    x2d = x.reshape(-1, d_model)
    M = x2d.shape[0]

    in_isz = jnp.dtype(x2d.dtype).itemsize
    out_isz = jnp.dtype(out_dtype).itemsize

    # --- lane-dense, tile-aligned padded dimensions ----------------------
    dmp = _round_up(d_model, 128)                       # d_model (lane axis)

    if vmem_limit_bytes is None:
        vmem_limit_bytes = _default_vmem_limit_bytes()
    vmem_limit_bytes = int(vmem_limit_bytes)
    tile_budget = int(vmem_limit_bytes * 0.8)

    tm_eff, tf_eff = _choose_tiles(M, d_ff, dmp, in_isz, out_isz,
                                   tile_budget, tm, tf)
    # Ensure >=2 token tiles (when possible) so both v7x cores get work.
    if M > 8:
        tm_eff = min(tm_eff, _round_up((M + 1) // 2, 8))

    mp = _round_up(M, tm_eff)
    dfp = _round_up(d_ff, tf_eff)
    nf = dfp // tf_eff
    n_tok_tiles = mp // tm_eff

    # --- pad + pre-tile weights so every block DMA is contiguous ---------
    # TODO(synk): in a real model, pre-format weights once outside the call.
    x_p = _pad2d(x2d, mp, dmp)
    w1_t = _pad2d(w1, dmp, dfp).reshape(dmp, nf, tf_eff).transpose(1, 0, 2)
    w2_t = _pad2d(w2, dmp, dfp).reshape(dmp, nf, tf_eff).transpose(1, 0, 2)
    w12_t = jnp.concatenate([w1_t, w2_t], axis=-1)        # (nf, dmp, 2*tf)
    wo_t = _pad2d(wo, dfp, dmp).reshape(nf, tf_eff, dmp)   # (nf, tf, dmp)
    b1_t = jnp.pad(b1, (0, dfp - d_ff)).reshape(nf, 1, tf_eff)
    b2_t = jnp.pad(b2, (0, dfp - d_ff)).reshape(nf, 1, tf_eff)
    b12_t = jnp.concatenate([b1_t, b2_t], axis=-1)         # (nf, 1, 2*tf) f32
    bo_p = jnp.pad(bo, (0, dmp - d_model)).reshape(1, dmp)  # (1, dmp) f32

    grid = (n_tok_tiles, nf)

    cost = pl.CostEstimate(
        flops=6 * M * d_model * d_ff,
        transcendentals=M * d_ff,
        bytes_accessed=int(M * d_model * in_isz               # x in
                           + M * d_model * out_isz            # out
                           + n_tok_tiles * (3 * d_model * d_ff * in_isz
                                            + (2 * d_ff + d_model) * 4)),
    )

    out_p = pl.pallas_call(
        expert_kernel,
        out_shape=jax.ShapeDtypeStruct((mp, dmp), out_dtype),
        grid_spec=pltpu.PrefetchScalarGridSpec(
            num_scalar_prefetch=0,
            grid=grid,
            in_specs=[
                pl.BlockSpec((tm_eff, dmp), lambda i, f: (i, 0)),            # x
                pl.BlockSpec((None, dmp, 2 * tf_eff), lambda i, f: (f, 0, 0)),  # W1|W2
                pl.BlockSpec((None, 1, 2 * tf_eff), lambda i, f: (f, 0, 0)),    # b1|b2
                pl.BlockSpec((None, tf_eff, dmp), lambda i, f: (f, 0, 0)),      # Wout
                pl.BlockSpec((1, dmp), lambda i, f: (0, 0)),                    # bout
            ],
            out_specs=pl.BlockSpec((tm_eff, dmp), lambda i, f: (i, 0)),
            scratch_shapes=[pltpu.VMEM((tm_eff, dmp), jnp.float32)],
        ),
        compiler_params=pltpu.CompilerParams(
            dimension_semantics=("parallel", "arbitrary"),
            vmem_limit_bytes=vmem_limit_bytes,
        ),
        cost_estimate=cost,
    )(x_p, w12_t, b12_t, wo_t, bo_p)

    return out_p[:M, :d_model].reshape(orig_shape)


# --------------------------------------------------------------------------
# Reference + test
# --------------------------------------------------------------------------
def _init_linear(key, fan_in, fan_out, dtype):
    """Deterministic init mimicking nn.Linear (kaiming-uniform-ish)."""
    kw, kb = jax.random.split(key)
    bound = 1.0 / (fan_in ** 0.5)
    # stored directly in [in, out] layout (== PyTorch weight.T)
    w = jax.random.uniform(kw, (fan_in, fan_out), dtype=jnp.float32,
                           minval=-bound, maxval=bound).astype(dtype)
    b = jax.random.uniform(kb, (fan_out,), dtype=jnp.float32,
                           minval=-bound, maxval=bound).astype(dtype)
    return w, b


def google_expert_reference(x, w1, b1, w2, b2, wo, bo):
    x1 = x @ w1 + b1
    x2 = x @ w2 + b2
    h = jax.nn.silu(x1) * x2
    return h @ wo + bo


if __name__ == "__main__":
    # small shapes consistent with the module: (batch, seq, d_model)
    batch, seq = 2, 8
    d_model, dim_feedforward = 32, 64
    dtype = jnp.float32

    key = jax.random.PRNGKey(0)
    kx, k1, k2, k3 = jax.random.split(key, 4)

    x = jax.random.normal(kx, (batch, seq, d_model), dtype=dtype)
    w1, b1 = _init_linear(k1, d_model, dim_feedforward, dtype)
    w2, b2 = _init_linear(k2, d_model, dim_feedforward, dtype)
    wo, bo = _init_linear(k3, dim_feedforward, d_model, dtype)

    ref = google_expert_reference(x, w1, b1, w2, b2, wo, bo)

    # exact f32 operand path
    out = google_expert_pallas(x, w1, b1, w2, b2, wo, bo, compute_dtype=None)
    out = jax.block_until_ready(out)
    assert out.shape == ref.shape == (batch, seq, d_model)
    assert jnp.allclose(out, ref, atol=1e-5, rtol=1e-5), "f32 mismatch vs ref"

    # default path: bf16 operands / f32 accumulation (loose check)
    out_bf16 = google_expert_pallas(x, w1, b1, w2, b2, wo, bo)
    out_bf16 = jax.block_until_ready(out_bf16)
    assert out_bf16.shape == ref.shape
    assert bool(jnp.all(jnp.isfinite(out_bf16)))
    assert jnp.allclose(out_bf16, ref, atol=5e-2, rtol=5e-2), "bf16 mismatch"

    print("KERNEL_OK")
</pallas_src>

<mosaic_0001>
module attributes {stable_mosaic.version = 11 : i64} {
  func.func @expert_kernel(%arg0: i32, %arg1: i32, %arg2: memref<8x128xf32, #tpu.memory_space<vmem>>, %arg3: memref<1x128x256xf32, #tpu.memory_space<vmem>>, %arg4: memref<1x1x256xf32, #tpu.memory_space<vmem>>, %arg5: memref<1x128x128xf32, #tpu.memory_space<vmem>>, %arg6: memref<1x128xf32, #tpu.memory_space<vmem>>, %arg7: memref<8x128xf32, #tpu.memory_space<vmem>>, %arg8: memref<8x128xf32, #tpu.memory_space<vmem>>) attributes {dimension_semantics = [#tpu.dimension_semantics<parallel>, #tpu.dimension_semantics<arbitrary>], iteration_bounds = array<i64: 2, 1>, scalar_prefetch = 0 : i64, scratch_operands = 1 : i64, tpu.core_type = #tpu.core_type<tc>, window_params = [{transform_indices = @transform_0, window_bounds = array<i64: 8, 128>}, {transform_indices = @transform_1, window_bounds = array<i64: 1, 128, 256>}, {transform_indices = @transform_2, window_bounds = array<i64: 1, 1, 256>}, {transform_indices = @transform_3, window_bounds = array<i64: 1, 128, 128>}, {pipeline_mode = #tpu.pipeline_mode<synchronous>, transform_indices = @transform_4, window_bounds = array<i64: 1, 128>}, {transform_indices = @transform_5, window_bounds = array<i64: 8, 128>}]} {
    %c0_i32 = arith.constant 0 : i32
    %0 = arith.cmpi eq, %arg1, %c0_i32 : i32
    %1 = arith.extui %0 : i1 to i32
    %c0_i32_0 = arith.constant 0 : i32
    %2 = arith.cmpi ne, %1, %c0_i32_0 : i32
    scf.if %2 {
      %cst_19 = arith.constant 0.000000e+00 : f32
      %29 = vector.broadcast %cst_19 : f32 to vector<8x128xf32>
      %c0_20 = arith.constant 0 : index
      %c0_21 = arith.constant 0 : index
      %30 = vector.load %arg8[%c0_20, %c0_21] : memref<8x128xf32, #tpu.memory_space<vmem>>, vector<8x128xf32>
      tpu.vector_store %arg8[%c0_20, %c0_21], %29 {strides = array<i32>} : memref<8x128xf32, #tpu.memory_space<vmem>>, vector<8x128xf32>,
    } else {
    }
    %c0 = arith.constant 0 : index
    %c0_1 = arith.constant 0 : index
    %3 = vector.load %arg2[%c0, %c0_1] : memref<8x128xf32, #tpu.memory_space<vmem>>, vector<8x128xf32>
    %c0_2 = arith.constant 0 : index
    %c0_3 = arith.constant 0 : index
    %c0_4 = arith.constant 0 : index
    %4 = vector.load %arg3[%c0_2, %c0_3, %c0_4] : memref<1x128x256xf32, #tpu.memory_space<vmem>>, vector<1x128x256xf32>
    %5 = vector.shape_cast %4 : vector<1x128x256xf32> to vector<128x256xf32>
    %cst = arith.constant dense<0.000000e+00> : vector<8x256xf32>
    %6 = tpu.matmul %3, %5, %cst {dimension_numbers = #tpu.dot_dimension_numbers<[1], [0], [0], [1], [0, 0, 1, 1], [], []>} : vector<8x128xf32>, vector<128x256xf32>, vector<8x256xf32> -> vector<8x256xf32>
    %c0_5 = arith.constant 0 : index
    %c0_6 = arith.constant 0 : index
    %c0_7 = arith.constant 0 : index
    %7 = vector.load %arg4[%c0_5, %c0_6, %c0_7] : memref<1x1x256xf32, #tpu.memory_space<vmem>>, vector<1x1x256xf32>
    %8 = vector.shape_cast %7 : vector<1x1x256xf32> to vector<1x256xf32>
    %9 = vector.broadcast %8 : vector<1x256xf32> to vector<8x256xf32>
    %10 = arith.addf %6, %9 : vector<8x256xf32>
    %11 = vector.extract_strided_slice %10 {offsets = [0, 0], sizes = [8, 128], strides = [1, 1]} : vector<8x256xf32> to vector<8x128xf32>
    %12 = vector.extract_strided_slice %10 {offsets = [0, 128], sizes = [8, 128], strides = [1, 1]} : vector<8x256xf32> to vector<8x128xf32>
    %13 = arith.negf %11 : vector<8x128xf32>
    %14 = math.exp %13 : vector<8x128xf32>
    %cst_8 = arith.constant 1.000000e+00 : f32
    %15 = vector.broadcast %cst_8 : f32 to vector<8x128xf32>
    %16 = arith.addf %15, %14 : vector<8x128xf32>
    %17 = arith.divf %15, %16 : vector<8x128xf32>
    %18 = arith.mulf %11, %17 : vector<8x128xf32>
    %19 = arith.mulf %18, %12 : vector<8x128xf32>
    %c0_9 = arith.constant 0 : index
    %c0_10 = arith.constant 0 : index
    %20 = vector.load %arg8[%c0_9, %c0_10] : memref<8x128xf32, #tpu.memory_space<vmem>>, vector<8x128xf32>
    %c0_11 = arith.constant 0 : index
    %c0_12 = arith.constant 0 : index
    %c0_13 = arith.constant 0 : index
    %21 = vector.load %arg5[%c0_11, %c0_12, %c0_13] : memref<1x128x128xf32, #tpu.memory_space<vmem>>, vector<1x128x128xf32>
    %22 = vector.shape_cast %21 : vector<1x128x128xf32> to vector<128x128xf32>
    %cst_14 = arith.constant dense<0.000000e+00> : vector<8x128xf32>
    %23 = tpu.matmul %19, %22, %cst_14 {dimension_numbers = #tpu.dot_dimension_numbers<[1], [0], [0], [1], [0, 0, 1, 1], [], []>} : vector<8x128xf32>, vector<128x128xf32>, vector<8x128xf32> -> vector<8x128xf32>
    %24 = arith.addf %20, %23 : vector<8x128xf32>
    %c0_15 = arith.constant 0 : index
    %c0_16 = arith.constant 0 : index
    %25 = vector.load %arg8[%c0_15, %c0_16] : memref<8x128xf32, #tpu.memory_space<vmem>>, vector<8x128xf32>
    tpu.vector_store %arg8[%c0_15, %c0_16], %24 {strides = array<i32>} : memref<8x128xf32, #tpu.memory_space<vmem>>, vector<8x128xf32>,
    %c0_i32_17 = arith.constant 0 : i32
    %26 = arith.cmpi eq, %arg1, %c0_i32_17 : i32
    %27 = arith.extui %26 : i1 to i32
    %c0_i32_18 = arith.constant 0 : i32
    %28 = arith.cmpi ne, %27, %c0_i32_18 : i32
    scf.if %28 {
      %c0_19 = arith.constant 0 : index
      %c0_20 = arith.constant 0 : index
      %29 = vector.load %arg8[%c0_19, %c0_20] : memref<8x128xf32, #tpu.memory_space<vmem>>, vector<8x128xf32>
      %c0_21 = arith.constant 0 : index
      %c0_22 = arith.constant 0 : index
      %30 = vector.load %arg6[%c0_21, %c0_22] : memref<1x128xf32, #tpu.memory_space<vmem>>, vector<1x128xf32>
      %31 = vector.broadcast %30 : vector<1x128xf32> to vector<8x128xf32>
      %32 = arith.addf %29, %31 : vector<8x128xf32>
      %c0_23 = arith.constant 0 : index
      %c0_24 = arith.constant 0 : index
      %33 = vector.load %arg7[%c0_23, %c0_24] : memref<8x128xf32, #tpu.memory_space<vmem>>, vector<8x128xf32>
      tpu.vector_store %arg7[%c0_23, %c0_24], %32 {strides = array<i32>} : memref<8x128xf32, #tpu.memory_space<vmem>>, vector<8x128xf32>,
    } else {
    }
    return
  }
  func.func @transform_0(%arg0: i32, %arg1: i32) -> (i32, i32) {
    %c0_i32 = arith.constant 0 : i32
    %c0_i32_0 = arith.constant 0 : i32
    return %arg0, %c0_i32 : i32, i32
  }
  func.func @transform_1(%arg0: i32, %arg1: i32) -> (i32, i32, i32) {
    %c0_i32 = arith.constant 0 : i32
    %c0_i32_0 = arith.constant 0 : i32
    %c0_i32_1 = arith.constant 0 : i32
    return %arg1, %c0_i32, %c0_i32_0 : i32, i32, i32
  }
  func.func @transform_2(%arg0: i32, %arg1: i32) -> (i32, i32, i32) {
    %c0_i32 = arith.constant 0 : i32
    %c0_i32_0 = arith.constant 0 : i32
    %c0_i32_1 = arith.constant 0 : i32
    return %arg1, %c0_i32, %c0_i32_0 : i32, i32, i32
  }
  func.func @transform_3(%arg0: i32, %arg1: i32) -> (i32, i32, i32) {
    %c0_i32 = arith.constant 0 : i32
    %c0_i32_0 = arith.constant 0 : i32
    %c0_i32_1 = arith.constant 0 : i32
    return %arg1, %c0_i32, %c0_i32_0 : i32, i32, i32
  }
  func.func @transform_4(%arg0: i32, %arg1: i32) -> (i32, i32) {
    %c0_i32 = arith.constant 0 : i32
    %c0_i32_0 = arith.constant 0 : i32
    %c0_i32_1 = arith.constant 0 : i32
    return %c0_i32, %c0_i32_0 : i32, i32
  }
  func.func @transform_5(%arg0: i32, %arg1: i32) -> (i32, i32) {
    %c0_i32 = arith.constant 0 : i32
    %c0_i32_0 = arith.constant 0 : i32
    return %arg0, %c0_i32 : i32, i32
  }
}

</mosaic_0001>

<llo_original>
// kernel: tpu_custom_call.1
$region0: #{tpu_custom_call.1}
  #allocation0 [shape = 'u32[]', space=smem, size = 0x4, offset = 0x4, fixed_abs, tag = 'smem constant byte address 0x4 - core index']
  #allocation1 [shape = 'u32[144,128]{1,0:T(1,128)}', space=vmem, size = 0x12000, scoped, tag = 'internal scratch']
  #allocation2 [shape = 'f32[8,128]{1,0:T(8,128)}', space=vmem, size = 0x1000, scoped, tag = 'scratch operand']
  %s0 = inlined_call_operand.hbm [shape: f32[16,128], index: 0, kind: input, shape index: {}]
  %s1 = inlined_call_operand.hbm [shape: f32[1,128,256], index: 1, kind: input, shape index: {}]
  %s2 = inlined_call_operand.hbm [shape: f32[1,1,256], index: 2, kind: input, shape index: {}]
  %s3 = inlined_call_operand.hbm [shape: f32[1,128,128], index: 3, kind: input, shape index: {}]
  %s4 = inlined_call_operand.hbm [shape: f32[1,128], index: 4, kind: input, shape index: {}]
  %s5 = inlined_call_operand.hbm [shape: f32[16,128], index: 5, kind: output, shape index: {}]
  %s6 = sld [smem:[#allocation0]]
  $region81: #{tpu_custom_call.1} parent=0
    _
  %s8 = ssub.s32 1, %s6
  %s9 = scalar_select 0, %s8, %s6
  $region1: #{tpu_custom_call.1} parent=0
    #allocation3 [shape = 'u8[8192]{0}', space=vmem, size = 0x2000, scoped, tag = 'input window, operand 0']
    #allocation4 [shape = 's32[2]{0}', space=sflag, size = 0x8, scoped, tag = 'scoped memory for tpu_custom_call.1']
    #allocation5 [shape = 's32[2]{0}', space=sflag, size = 0x8, scoped, tag = 'scoped memory for tpu_custom_call.1']
    #allocation6 [shape = 'u8[131072]{0}', space=vmem, size = 0x20000, scoped, tag = 'input window, operand 1, single buffered']
    #allocation7 [shape = 's32[1]{0}', space=sflag, size = 0x4, scoped, tag = 'scoped memory for tpu_custom_call.1']
    #allocation8 [shape = 'u8[1024]{0}', space=vmem, size = 0x400, scoped, tag = 'input window, operand 2, single buffered']
    #allocation9 [shape = 'u8[65536]{0}', space=vmem, size = 0x10000, scoped, tag = 'input window, operand 3, single buffered']
    #allocation10 [shape = 's32[1]{0}', space=sflag, size = 0x4, scoped, tag = 'scoped memory for tpu_custom_call.1']
    #allocation11 [shape = 'u8[512]{0}', space=vmem, size = 0x400, scoped, tag = 'input window, operand 4, single buffered']
    #allocation12 [shape = 'u8[8192]{0}', space=vmem, size = 0x2000, scoped, tag = 'output window, operand 0']
    %10 = vsyncpa [#allocation4], 0
    %s11 = scalar_lea.sflag [#allocation4], 1
    %12 = vsyncpa %s11, 0
    %13 = vsyncpa [#allocation7], 0
    %14 = vsyncpa [#allocation10], 0
    %15 = vsyncpa [#allocation5], 0
    %s16 = scalar_lea.sflag [#allocation5], 1
    %17 = vsyncpa %s16, 0
    loop: start=0, step=1, limit=4
    $region2: #{tpu_custom_call.1} parent=1 // loop_pre_header
      _
    $region3: #{tpu_custom_call.1} parent=1 // loop_header
      %s19 = sphi 0, %s23
      %p20 = scmp.ge.s32.totalorder %s19, 4
      %s26 = sphi 0, %s38
      %s27 = sphi 0, %s34
      %s28 = sphi 0, %s26
      %s29 = sphi 0, %s27
      %s30 = sphi 0, %s28
      %s31 = sphi 0, %s29
      %s41 = sphi 0, %s43
      %s44 = sphi 0, %s41
      %s45 = sphi 0, %s44
      %s61 = sphi 0, %s45
      %s67 = sphi 0, %s69
      %s70 = sphi 0, %s67
      %s71 = sphi 0, %s70
      %s87 = sphi 0, %s71
      %s93 = sphi 0, %s95
      %s96 = sphi 0, %s93
      %s97 = sphi 0, %s96
      %s113 = sphi 0, %s97
      %s119 = sphi 0, %s121
      %s122 = sphi 0, %s119
      %s123 = sphi 0, %s122
      %s139 = sphi 0, %s123
      %s143 = sphi 0, %s143
      %s145 = sphi 0, %s143
      %s146 = sphi 0, %s145
      %s160 = sphi 0, %s146
      %s166 = sphi 0, %s168
      %s169 = sphi 0, %s166
      %s170 = sphi 0, %s169
      %s186 = sphi 0, %s170
    $region4: #{tpu_custom_call.1} parent=1 // loop_header_branch
      %22 = sbr.rel (%p20) target = $region8
    $region5: #{tpu_custom_call.1} parent=1 // loop_body
      %s24 = ssub.s32 %s19, 1
      %s25 = ssub.s32 %s19, 2
      %s32 = sadd.s32 1, %s27
      %p33 = scmp.ge.s32.totalorder %s32, 1
      %s34 = scalar_select %p33, 0, %s32
      %s35 = sadd.s32 1, %s26
      %s36 = scalar_select %p33, %s35, %s26
      %p37 = scmp.ge.s32.totalorder %s36, 2
      %s38 = scalar_select %p37, 0, %s36
      %s39 = ssub.s32 %s26, %s38
      %p40 = scmp.eq.s32.totalorder %s39, 0
      %s42 = sadd.s32 %s41, 1
      %s43 = scalar_select %p40, %s41, %s42
      %p46 = pneg %p40
      %p47 = scmp.eq.s32.totalorder %s19, 1
      %p48 = por %p46, %p47
      %p49 = scmp.ne.s32.totalorder %s41, %s44
      %p50 = scmp.eq.s32.totalorder %s19, 0
      %p51 = por %p49, %p50
      %p52 = scmp.ne.s32.totalorder %s41, %s44
      %p53 = scmp.eq.s32.totalorder %s24, 1
      %p54 = por %p52, %p53
      %p55 = scmp.ne.s32.totalorder %s44, %s45
      %p56 = scmp.eq.s32.totalorder %s24, 0
      %p57 = por %p55, %p56
      %p58 = scmp.ne.s32.totalorder %s44, %s45
      %p59 = scmp.eq.s32.totalorder %s25, 1
      %p60 = por %p58, %p59
      %p62 = scmp.ne.s32.totalorder %s45, %s61
      %p63 = scmp.eq.s32.totalorder %s25, 0
      %p64 = por %p62, %p63
      %s65 = ssub.s32 %s27, %s34
      %p66 = scmp.eq.s32.totalorder %s65, 0
      %s68 = sadd.s32 %s67, 1
      %s69 = scalar_select %p66, %s67, %s68
      %p72 = pneg %p66
      %p73 = scmp.eq.s32.totalorder %s19, 1
      %p74 = por %p72, %p73
      %p75 = scmp.ne.s32.totalorder %s67, %s70
      %p76 = scmp.eq.s32.totalorder %s19, 0
      %p77 = por %p75, %p76
      %p78 = scmp.ne.s32.totalorder %s67, %s70
      %p79 = scmp.eq.s32.totalorder %s24, 1
      %p80 = por %p78, %p79
      %p81 = scmp.ne.s32.totalorder %s70, %s71
      %p82 = scmp.eq.s32.totalorder %s24, 0
      %p83 = por %p81, %p82
      %p84 = scmp.ne.s32.totalorder %s70, %s71
      %p85 = scmp.eq.s32.totalorder %s25, 1
      %p86 = por %p84, %p85
      %p88 = scmp.ne.s32.totalorder %s71, %s87
      %p89 = scmp.eq.s32.totalorder %s25, 0
      %p90 = por %p88, %p89
      %s91 = ssub.s32 %s27, %s34
      %p92 = scmp.eq.s32.totalorder %s91, 0
      %s94 = sadd.s32 %s93, 1
      %s95 = scalar_select %p92, %s93, %s94
      %p98 = pneg %p92
      %p99 = scmp.eq.s32.totalorder %s19, 1
      %p100 = por %p98, %p99
      %p101 = scmp.ne.s32.totalorder %s93, %s96
      %p102 = scmp.eq.s32.totalorder %s19, 0
      %p103 = por %p101, %p102
      %p104 = scmp.ne.s32.totalorder %s93, %s96
      %p105 = scmp.eq.s32.totalorder %s24, 1
      %p106 = por %p104, %p105
      %p107 = scmp.ne.s32.totalorder %s96, %s97
      %p108 = scmp.eq.s32.totalorder %s24, 0
      %p109 = por %p107, %p108
      %p110 = scmp.ne.s32.totalorder %s96, %s97
      %p111 = scmp.eq.s32.totalorder %s25, 1
      %p112 = por %p110, %p111
      %p114 = scmp.ne.s32.totalorder %s97, %s113
      %p115 = scmp.eq.s32.totalorder %s25, 0
      %p116 = por %p114, %p115
      %s117 = ssub.s32 %s27, %s34
      %p118 = scmp.eq.s32.totalorder %s117, 0
      %s120 = sadd.s32 %s119, 1
      %s121 = scalar_select %p118, %s119, %s120
      %p124 = pneg %p118
      %p125 = scmp.eq.s32.totalorder %s19, 1
      %p126 = por %p124, %p125
      %p127 = scmp.ne.s32.totalorder %s119, %s122
      %p128 = scmp.eq.s32.totalorder %s19, 0
      %p129 = por %p127, %p128
      %p130 = scmp.ne.s32.totalorder %s119, %s122
      %p131 = scmp.eq.s32.totalorder %s24, 1
      %p132 = por %p130, %p131
      %p133 = scmp.ne.s32.totalorder %s122, %s123
      %p134 = scmp.eq.s32.totalorder %s24, 0
      %p135 = por %p133, %p134
      %p136 = scmp.ne.s32.totalorder %s122, %s123
      %p137 = scmp.eq.s32.totalorder %s25, 1
      %p138 = por %p136, %p137
      %p140 = scmp.ne.s32.totalorder %s123, %s139
      %p141 = scmp.eq.s32.totalorder %s25, 0
      %p142 = por %p140, %p141
      %s144 = sadd.s32 %s143, 1
      %p147 = scmp.eq.s32.totalorder %s19, 1
      %p148 = scmp.ne.s32.totalorder %s143, %s145
      %p149 = scmp.eq.s32.totalorder %s19, 0
      %p150 = por %p148, %p149
      %p151 = scmp.ne.s32.totalorder %s143, %s145
      %p152 = scmp.eq.s32.totalorder %s24, 1
      %p153 = por %p151, %p152
      %p154 = scmp.ne.s32.totalorder %s145, %s146
      %p155 = scmp.eq.s32.totalorder %s24, 0
      %p156 = por %p154, %p155
      %p157 = scmp.ne.s32.totalorder %s145, %s146
      %p158 = scmp.eq.s32.totalorder %s25, 1
      %p159 = por %p157, %p158
      %p161 = scmp.ne.s32.totalorder %s146, %s160
      %p162 = scmp.eq.s32.totalorder %s25, 0
      %p163 = por %p161, %p162
      %s164 = ssub.s32 %s26, %s38
      %p165 = scmp.eq.s32.totalorder %s164, 0
      %s167 = sadd.s32 %s166, 1
      %s168 = scalar_select %p165, %s166, %s167
      %p171 = pneg %p165
      %p172 = scmp.eq.s32.totalorder %s19, 1
      %p173 = por %p171, %p172
      %p174 = scmp.ne.s32.totalorder %s166, %s169
      %p175 = scmp.eq.s32.totalorder %s19, 0
      %p176 = por %p174, %p175
      %p177 = scmp.ne.s32.totalorder %s166, %s169
      %p178 = scmp.eq.s32.totalorder %s24, 1
      %p179 = por %p177, %p178
      %p180 = scmp.ne.s32.totalorder %s169, %s170
      %p181 = scmp.eq.s32.totalorder %s24, 0
      %p182 = por %p180, %p181
      %p183 = scmp.ne.s32.totalorder %s169, %s170
      %p184 = scmp.eq.s32.totalorder %s25, 1
      %p185 = por %p183, %p184
      %p187 = scmp.ne.s32.totalorder %s170, %s186
      %p188 = scmp.eq.s32.totalorder %s25, 0
      %p189 = por %p187, %p188
      %p190 = scmp.le.s32.totalorder 1, %s19
      %p191 = scmp.lt.s32.totalorder %s19, 3
      %p192 = pnand %p190, %p191
      %p193 = pneg %p192
      // Predicated region
      $region9: #{tpu_custom_call.1} parent=5 // pred_check
        _
      $region10: #{tpu_custom_call.1} parent=5 // pred_check_branch
        %195 = sbr.rel (%p192) target = $region12
      $region11: #{tpu_custom_call.1} parent=5 // pred_region
        %s196 = ssub.s32 %s19, 1
        // Predicated region
        $region13: #{tpu_custom_call.1} parent=11 // pred_check
          %p197 = pneg %p83
        $region14: #{tpu_custom_call.1} parent=11 // pred_check_branch
          %199 = sbr.rel (%p197) target = $region16
        $region15: #{tpu_custom_call.1} parent=11 // pred_region
          %s201 = ssub.s32 4096, 4096
          %202 = vsyncadd [#allocation7], %s201
          %s203 = smul.addr %s29, 32
          %s204 = smul.addr %s203, 128
          %s205 = scalar_lea.hbm %s1, %s204
          %s206 = sshll.u32 [#allocation6], 4
          %s207 = int_to_ptr.vmem [resolvable:$true] %s206
          %212 = dma.hbm_to_vmem [thread:$0]  %s205, 4096, %s207, [#allocation7], 256, 256, 16
        $region16: #{tpu_custom_call.1} parent=11 // pred_fallthru
          _
        // Predicated region
        $region17: #{tpu_custom_call.1} parent=11 // pred_check
          %p213 = pneg %p109
        $region18: #{tpu_custom_call.1} parent=11 // pred_check_branch
          %215 = sbr.rel (%p213) target = $region20
        $region19: #{tpu_custom_call.1} parent=11 // pred_region
          %s217 = ssub.s32 32, 32
          %218 = vsyncadd [#allocation7], %s217
          %s219 = smul.addr %s29, 2
          %s220 = smul.addr %s219, 16
          %s221 = scalar_lea.hbm %s2, %s220
          %s223 = sshll.u32 [#allocation8], 4
          %s224 = int_to_ptr.vmem [resolvable:$true] %s223
          %226 = dma.hbm_to_vmem [thread:$0]  %s221, 32, %s224, [#allocation7]
        $region20: #{tpu_custom_call.1} parent=11 // pred_fallthru
          _
        // Predicated region
        $region21: #{tpu_custom_call.1} parent=11 // pred_check
          %p227 = pneg %p135
        $region22: #{tpu_custom_call.1} parent=11 // pred_check_branch
          %229 = sbr.rel (%p227) target = $region24
        $region23: #{tpu_custom_call.1} parent=11 // pred_region
          %s231 = ssub.s32 2048, 2048
          %232 = vsyncadd [#allocation10], %s231
          %s233 = smul.addr %s29, 16
          %s234 = smul.addr %s233, 128
          %s235 = scalar_lea.hbm %s3, %s234
          %s236 = sshll.u32 [#allocation9], 4
          %s237 = int_to_ptr.vmem [resolvable:$true] %s236
          %242 = dma.hbm_to_vmem [thread:$0]  %s235, 2048, %s237, [#allocation10], 128, 128, 8
        $region24: #{tpu_custom_call.1} parent=11 // pred_fallthru
          _
        // Predicated region
        $region25: #{tpu_custom_call.1} parent=11 // pred_check
          %p243 = pneg %p156
        $region26: #{tpu_custom_call.1} parent=11 // pred_check_branch
          %245 = sbr.rel (%p243) target = $region28
        $region27: #{tpu_custom_call.1} parent=11 // pred_region
          %s247 = ssub.s32 16, 16
          %248 = vsyncadd [#allocation10], %s247
          %s250 = sshll.u32 [#allocation11], 4
          %s251 = int_to_ptr.vmem [resolvable:$true] %s250
          %253 = dma.hbm_to_vmem [thread:$0]  %s4, 16, %s251, [#allocation10]
        $region28: #{tpu_custom_call.1} parent=11 // pred_fallthru
          _
      $region12: #{tpu_custom_call.1} parent=5 // pred_fallthru
        _
      %p254 = scmp.lt.s32.totalorder %s19, 2
      // Predicated region
      $region29: #{tpu_custom_call.1} parent=5 // pred_check
        %p255 = pneg %p254
      $region30: #{tpu_custom_call.1} parent=5 // pred_check_branch
        %257 = sbr.rel (%p255) target = $region32
      $region31: #{tpu_custom_call.1} parent=5 // pred_region
        // Predicated region
        $region33: #{tpu_custom_call.1} parent=31 // pred_check
          %p258 = pneg %p51
        $region34: #{tpu_custom_call.1} parent=31 // pred_check_branch
          %260 = sbr.rel (%p258) target = $region36
        $region35: #{tpu_custom_call.1} parent=31 // pred_region
          %s261 = sand.u32 %s41, 1
          %s262 = scalar_lea.sflag [#allocation4], %s261
          %s263 = sand.u32 %s41, 1
          %s264 = smul.addr %s263, 8
          %s265 = scalar_lea.vmem [#allocation3], %s264
          %s267 = ssub.s32 128, 128
          %268 = vsyncadd %s262, %s267
          %s269 = smul.addr %s26, 128
          %s270 = scalar_lea.hbm %s0, %s269
          %s272 = sshll.u32 %s265, 4
          %s273 = int_to_ptr.vmem [resolvable:$true] %s272
          %275 = dma.hbm_to_vmem [thread:$0]  %s270, 128, %s273, %s262
        $region36: #{tpu_custom_call.1} parent=31 // pred_fallthru
          _
      $region32: #{tpu_custom_call.1} parent=5 // pred_fallthru
        _
      %p276 = scmp.le.s32.totalorder 1, %s19
      %p277 = scmp.lt.s32.totalorder %s19, 3
      %p278 = pnand %p276, %p277
      %p279 = pneg %p278
      // Predicated region
      $region37: #{tpu_custom_call.1} parent=5 // pred_check
        _
      $region38: #{tpu_custom_call.1} parent=5 // pred_check_branch
        %281 = sbr.rel (%p278) target = $region40
      $region39: #{tpu_custom_call.1} parent=5 // pred_region
        %s282 = ssub.s32 %s19, 1
        %s283 = sand.u32 %s44, 1
        %s284 = scalar_lea.sflag [#allocation4], %s283
        %s285 = sand.u32 %s44, 1
        %s286 = smul.addr %s285, 8
        %s287 = scalar_lea.vmem [#allocation3], %s286
        // Predicated region
        $region41: #{tpu_custom_call.1} parent=39 // pred_check
          %p288 = pneg %p57
        $region42: #{tpu_custom_call.1} parent=39 // pred_check_branch
          %290 = sbr.rel (%p288) target = $region44
        $region43: #{tpu_custom_call.1} parent=39 // pred_region
          %291 = dma.done %s284, 128
        $region44: #{tpu_custom_call.1} parent=39 // pred_fallthru
          _
        // Predicated region
        $region45: #{tpu_custom_call.1} parent=39 // pred_check
          %p292 = pneg %p83
        $region46: #{tpu_custom_call.1} parent=39 // pred_check_branch
          %294 = sbr.rel (%p292) target = $region48
        $region47: #{tpu_custom_call.1} parent=39 // pred_region
          %295 = dma.done [#allocation7], 4096
        $region48: #{tpu_custom_call.1} parent=39 // pred_fallthru
          _
        // Predicated region
        $region49: #{tpu_custom_call.1} parent=39 // pred_check
          %p296 = pneg %p109
        $region50: #{tpu_custom_call.1} parent=39 // pred_check_branch
          %298 = sbr.rel (%p296) target = $region52
        $region51: #{tpu_custom_call.1} parent=39 // pred_region
          %299 = dma.done [#allocation7], 32
        $region52: #{tpu_custom_call.1} parent=39 // pred_fallthru
          _
        // Predicated region
        $region53: #{tpu_custom_call.1} parent=39 // pred_check
          %p300 = pneg %p135
        $region54: #{tpu_custom_call.1} parent=39 // pred_check_branch
          %302 = sbr.rel (%p300) target = $region56
        $region55: #{tpu_custom_call.1} parent=39 // pred_region
          %303 = dma.done [#allocation10], 2048
        $region56: #{tpu_custom_call.1} parent=39 // pred_fallthru
          _
        // Predicated region
        $region57: #{tpu_custom_call.1} parent=39 // pred_check
          %p304 = pneg %p156
        $region58: #{tpu_custom_call.1} parent=39 // pred_check_branch
          %306 = sbr.rel (%p304) target = $region60
        $region59: #{tpu_custom_call.1} parent=39 // pred_region
          %307 = dma.done [#allocation10], 16
        $region60: #{tpu_custom_call.1} parent=39 // pred_fallthru
          _
        %s308 = sand.u32 %s44, 1
        %s309 = scalar_lea.sflag [#allocation4], %s308
        %s310 = sand.u32 %s44, 1
        %s311 = smul.addr %s310, 8
        %s312 = scalar_lea.vmem [#allocation3], %s311
        %p313 = pneg %p57
        %p314 = pneg %p54
        %p315 = pneg %p83
        %p316 = pneg %p80
        %p317 = pneg %p109
        %p318 = pneg %p106
        %p319 = pneg %p135
        %p320 = pneg %p132
        %p321 = pneg %p156
        %p322 = pneg %p153
        %p323 = pneg %p182
        %p324 = pneg %p179
        %s325 = sand.u32 %s169, 1
        %s326 = scalar_lea.sflag [#allocation5], %s325
        %s327 = sand.u32 %s169, 1
        %s328 = smul.addr %s327, 8
        %s329 = scalar_lea.vmem [#allocation12], %s328
        %p330 = scmp.eq.s32.totalorder %s29, 0
        // Predicated region
        $region61: #{tpu_custom_call.1} parent=39 // pred_check
          %p331 = pneg %p330
        $region62: #{tpu_custom_call.1} parent=39 // pred_check_branch
          %333 = sbr.rel (%p331) target = $region64
        $region63: #{tpu_custom_call.1} parent=39 // pred_region
          %334 = vst [vmem:[#allocation2] sm:$0xff] 0.0
        $region64: #{tpu_custom_call.1} parent=39 // pred_fallthru
          _
        %v335 = vld [vmem:[%s287] sm:$0xff]
        %v336 = vld [vmem:[#allocation6] sm:$0xff]
        %v337 = vld [vmem:[#allocation6 + $0x8] sm:$0xff]
        %v338 = vld [vmem:[#allocation6 + $0x10] sm:$0xff]
        %v339 = vld [vmem:[#allocation6 + $0x18] sm:$0xff]
        %v340 = vld [vmem:[#allocation6 + $0x20] sm:$0xff]
        %v341 = vld [vmem:[#allocation6 + $0x28] sm:$0xff]
        %v342 = vld [vmem:[#allocation6 + $0x30] sm:$0xff]
        %v343 = vld [vmem:[#allocation6 + $0x38] sm:$0xff]
        %v344 = vld [vmem:[#allocation6 + $0x40] sm:$0xff]
        %v345 = vld [vmem:[#allocation6 + $0x48] sm:$0xff]
        %v346 = vld [vmem:[#allocation6 + $0x50] sm:$0xff]
        %v347 = vld [vmem:[#allocation6 + $0x58] sm:$0xff]
        %v348 = vld [vmem:[#allocation6 + $0x60] sm:$0xff]
        %v349 = vld [vmem:[#allocation6 + $0x68] sm:$0xff]
        %v350 = vld [vmem:[#allocation6 + $0x70] sm:$0xff]
        %v351 = vld [vmem:[#allocation6 + $0x78] sm:$0xff]
        %v352 = vld [vmem:[#allocation6 + $0x80] sm:$0xff]
        %v353 = vld [vmem:[#allocation6 + $0x88] sm:$0xff]
        %v354 = vld [vmem:[#allocation6 + $0x90] sm:$0xff]
        %v355 = vld [vmem:[#allocation6 + $0x98] sm:$0xff]
        %v356 = vld [vmem:[#allocation6 + $0xa0] sm:$0xff]
        %v357 = vld [vmem:[#allocation6 + $0xa8] sm:$0xff]
        %v358 = vld [vmem:[#allocation6 + $0xb0] sm:$0xff]
        %v359 = vld [vmem:[#allocation6 + $0xb8] sm:$0xff]
        %v360 = vld [vmem:[#allocation6 + $0xc0] sm:$0xff]
        %v361 = vld [vmem:[#allocation6 + $0xc8] sm:$0xff]
        %v362 = vld [vmem:[#allocation6 + $0xd0] sm:$0xff]
        %v363 = vld [vmem:[#allocation6 + $0xd8] sm:$0xff]
        %v364 = vld [vmem:[#allocation6 + $0xe0] sm:$0xff]
        %v365 = vld [vmem:[#allocation6 + $0xe8] sm:$0xff]
        %v366 = vld [vmem:[#allocation6 + $0xf0] sm:$0xff]
        %v367 = vld [vmem:[#allocation6 + $0xf8] sm:$0xff]
        %v368 = vld [vmem:[#allocation8] sm:$0x3]
        %v370 = vlaneseq
        %v371 = vshrl.u32 %v370, 7
        %v372 = vsub.s32 0, %v371
        %v373 = vrot.slane %v368, %v372
        %v374 = vlaneseq
        %v375 = vshrl.u32 %v374, 7
        %v376 = vsub.s32 1, %v375
        %v377 = vrot.slane %v368, %v376
        %380 = vmatprep.subr.mxu0 %v337
        %381 = vmatpush1.msra.mxu0 %v336
        %382 = vmatprep.subr.mxu0 %v339
        %383 = vmatpush1.msra.mxu0 %v338
        %384 = vmatprep.subr.mxu0 %v341
        %385 = vmatpush1.msra.mxu0 %v340
        %386 = vmatprep.subr.mxu0 %v343
        %387 = vmatpush1.msra.mxu0 %v342
        %388 = vmatprep.subr.mxu0 %v345
        %389 = vmatpush1.msra.mxu0 %v344
        %390 = vmatprep.subr.mxu0 %v347
        %391 = vmatpush1.msra.mxu0 %v346
        %392 = vmatprep.subr.mxu0 %v349
        %393 = vmatpush1.msra.mxu0 %v348
        %394 = vmatprep.subr.mxu0 %v351
        %395 = vmatpush1.msra.mxu0 %v350
        %396 = vmatprep.subr.mxu0 %v353
        %397 = vmatpush1.msra.mxu0 %v352
        %398 = vmatprep.subr.mxu0 %v355
        %399 = vmatpush1.msra.mxu0 %v354
        %400 = vmatprep.subr.mxu0 %v357
        %401 = vmatpush1.msra.mxu0 %v356
        %402 = vmatprep.subr.mxu0 %v359
        %403 = vmatpush1.msra.mxu0 %v358
        %404 = vmatprep.subr.mxu0 %v361
        %405 = vmatpush1.msra.mxu0 %v360
        %406 = vmatprep.subr.mxu0 %v363
        %407 = vmatpush1.msra.mxu0 %v362
        %408 = vmatprep.subr.mxu0 %v365
        %409 = vmatpush1.msra.mxu0 %v364
        %410 = vmatprep.subr.mxu0 %v367
        %411 = vmatpush1.msra.mxu0 %v366
        %412 = vmatprep.subr.mxu0 0.0
        %413 = vmatpush1.msra.mxu0 0.0
        %414 = vmatprep.subr.mxu0 0.0
        %415 = vmatpush1.msra.mxu0 0.0
        %416 = vmatprep.subr.mxu0 0.0
        %417 = vmatpush1.msra.mxu0 0.0
        %418 = vmatprep.subr.mxu0 0.0
        %419 = vmatpush1.msra.mxu0 0.0
        %420 = vmatprep.subr.mxu0 0.0
        %421 = vmatpush1.msra.mxu0 0.0
        %422 = vmatprep.subr.mxu0 0.0
        %423 = vmatpush1.msra.mxu0 0.0
        %424 = vmatprep.subr.mxu0 0.0
        %425 = vmatpush1.msra.mxu0 0.0
        %426 = vmatprep.subr.mxu0 0.0
        %427 = vmatpush1.msra.mxu0 0.0
        %428 = vmatprep.subr.mxu0 0.0
        %429 = vmatpush1.msra.mxu0 0.0
        %430 = vmatprep.subr.mxu0 0.0
        %431 = vmatpush1.msra.mxu0 0.0
        %432 = vmatprep.subr.mxu0 0.0
        %433 = vmatpush1.msra.mxu0 0.0
        %434 = vmatprep.subr.mxu0 0.0
        %435 = vmatpush1.msra.mxu0 0.0
        %436 = vmatprep.subr.mxu0 0.0
        %437 = vmatpush1.msra.mxu0 0.0
        %438 = vmatprep.subr.mxu0 0.0
        %439 = vmatpush1.msra.mxu0 0.0
        %440 = vmatprep.subr.mxu0 0.0
        %441 = vmatpush1.msra.mxu0 0.0
        %442 = vmatprep.subr.mxu0 0.0
        %443 = vmatpush1.msra.mxu0 0.0
        %444 = vmatprep.mubr.f32.mxu0 0.0
        %445 = vmatmul.mubr.f32.gmra.mrb[0].mxu0 %v335
        %v446 = vpop.f32.mrb[0].mxu0
        %v447 = vadd.f32 %v373, %v446
        %v448 = vpop.f32.mrb[0].mxu0
        %v449 = vadd.f32 %v377, %v448
        %450 = vdwg.mxu0
        %v451 = vxor.u32 %v447, 2147483648
        %v452 = vmul.f32 %v451, 1.442695
        %v453 = vpow.pop %v452
        %v454 = vadd.f32 %v453, 1.0
        %v455 = vrcp.pop %v454
        %v456 = vmul.f32 1.0, %v455
        %v457 = vmul.f32 %v447, %v456
        %v458 = vmul.f32 %v457, %v449
        %v459 = vld [vmem:[#allocation2] sm:$0xff]
        %v460 = vld [vmem:[#allocation9] sm:$0xff]
        %v461 = vld [vmem:[#allocation9 + $0x8] sm:$0xff]
        %v462 = vld [vmem:[#allocation9 + $0x10] sm:$0xff]
        %v463 = vld [vmem:[#allocation9 + $0x18] sm:$0xff]
        %v464 = vld [vmem:[#allocation9 + $0x20] sm:$0xff]
        %v465 = vld [vmem:[#allocation9 + $0x28] sm:$0xff]
        %v466 = vld [vmem:[#allocation9 + $0x30] sm:$0xff]
        %v467 = vld [vmem:[#allocation9 + $0x38] sm:$0xff]
        %v468 = vld [vmem:[#allocation9 + $0x40] sm:$0xff]
        %v469 = vld [vmem:[#allocation9 + $0x48] sm:$0xff]
        %v470 = vld [vmem:[#allocation9 + $0x50] sm:$0xff]
        %v471 = vld [vmem:[#allocation9 + $0x58] sm:$0xff]
        %v472 = vld [vmem:[#allocation9 + $0x60] sm:$0xff]
        %v473 = vld [vmem:[#allocation9 + $0x68] sm:$0xff]
        %v474 = vld [vmem:[#allocation9 + $0x70] sm:$0xff]
        %v475 = vld [vmem:[#allocation9 + $0x78] sm:$0xff]
        %476 = vmatprep.subr.mxu0 0.0
        %477 = vmatpush1.msra.mxu0 %v460
        %478 = vmatprep.subr.mxu0 0.0
        %479 = vmatpush1.msra.mxu0 %v461
        %480 = vmatprep.subr.mxu0 0.0
        %481 = vmatpush1.msra.mxu0 %v462
        %482 = vmatprep.subr.mxu0 0.0
        %483 = vmatpush1.msra.mxu0 %v463
        %484 = vmatprep.subr.mxu0 0.0
        %485 = vmatpush1.msra.mxu0 %v464
        %486 = vmatprep.subr.mxu0 0.0
        %487 = vmatpush1.msra.mxu0 %v465
        %488 = vmatprep.subr.mxu0 0.0
        %489 = vmatpush1.msra.mxu0 %v466
        %490 = vmatprep.subr.mxu0 0.0
        %491 = vmatpush1.msra.mxu0 %v467
        %492 = vmatprep.subr.mxu0 0.0
        %493 = vmatpush1.msra.mxu0 %v468
        %494 = vmatprep.subr.mxu0 0.0
        %495 = vmatpush1.msra.mxu0 %v469
        %496 = vmatprep.subr.mxu0 0.0
        %497 = vmatpush1.msra.mxu0 %v470
        %498 = vmatprep.subr.mxu0 0.0
        %499 = vmatpush1.msra.mxu0 %v471
        %500 = vmatprep.subr.mxu0 0.0
        %501 = vmatpush1.msra.mxu0 %v472
        %502 = vmatprep.subr.mxu0 0.0
        %503 = vmatpush1.msra.mxu0 %v473
        %504 = vmatprep.subr.mxu0 0.0
        %505 = vmatpush1.msra.mxu0 %v474
        %506 = vmatprep.subr.mxu0 0.0
        %507 = vmatpush1.msra.mxu0 %v475
        %508 = vmatprep.subr.mxu0 0.0
        %509 = vmatpush1.msra.mxu0 0.0
        %510 = vmatprep.subr.mxu0 0.0
        %511 = vmatpush1.msra.mxu0 0.0
        %512 = vmatprep.subr.mxu0 0.0
        %513 = vmatpush1.msra.mxu0 0.0
        %514 = vmatprep.subr.mxu0 0.0
        %515 = vmatpush1.msra.mxu0 0.0
        %516 = vmatprep.subr.mxu0 0.0
        %517 = vmatpush1.msra.mxu0 0.0
        %518 = vmatprep.subr.mxu0 0.0
        %519 = vmatpush1.msra.mxu0 0.0
        %520 = vmatprep.subr.mxu0 0.0
        %521 = vmatpush1.msra.mxu0 0.0
        %522 = vmatprep.subr.mxu0 0.0
        %523 = vmatpush1.msra.mxu0 0.0
        %524 = vmatprep.subr.mxu0 0.0
        %525 = vmatpush1.msra.mxu0 0.0
        %526 = vmatprep.subr.mxu0 0.0
        %527 = vmatpush1.msra.mxu0 0.0
        %528 = vmatprep.subr.mxu0 0.0
        %529 = vmatpush1.msra.mxu0 0.0
        %530 = vmatprep.subr.mxu0 0.0
        %531 = vmatpush1.msra.mxu0 0.0
        %532 = vmatprep.subr.mxu0 0.0
        %533 = vmatpush1.msra.mxu0 0.0
        %534 = vmatprep.subr.mxu0 0.0
        %535 = vmatpush1.msra.mxu0 0.0
        %536 = vmatprep.subr.mxu0 0.0
        %537 = vmatpush1.msra.mxu0 0.0
        %538 = vmatprep.subr.mxu0 0.0
        %539 = vmatpush1.msra.mxu0 0.0
        %540 = vmatprep.mubr.f32.mxu0 0.0
        %541 = vmatmul.mubr.f32.gmra.mrb[0].mxu0 %v458
        %v542 = vpop.f32.mrb[0].mxu0
        %v543 = vadd.f32 0.0, %v542
        %v544 = vpop.f32.mrb[0].mxu0
        %545 = vdwg.mxu0
        %v546 = vadd.f32 %v459, %v543
        %547 = vst [vmem:[#allocation2] sm:$0xff] %v546
        // Predicated region
        $region65: #{tpu_custom_call.1} parent=39 // pred_check
          %p548 = pneg %p330
        $region66: #{tpu_custom_call.1} parent=39 // pred_check_branch
          %550 = sbr.rel (%p548) target = $region68
        $region67: #{tpu_custom_call.1} parent=39 // pred_region
          %v551 = vld [vmem:[#allocation2] sm:$0xff]
          %v552 = vld [vmem:[#allocation11] sm:$0x1]
          %v554 = vlaneseq
          %v555 = vshrl.u32 %v554, 7
          %v556 = vsub.s32 0, %v555
          %v557 = vrot.slane %v552, %v556
          %v559 = vadd.f32 %v551, %v557
          %560 = vst [vmem:[%s329] sm:$0xff] %v559
        $region68: #{tpu_custom_call.1} parent=39 // pred_fallthru
          _
        %s561 = sand.u32 %s169, 1
        %s562 = scalar_lea.sflag [#allocation5], %s561
        %s563 = sand.u32 %s169, 1
        %s564 = smul.addr %s563, 8
        %s565 = scalar_lea.vmem [#allocation12], %s564
        // Predicated region
        $region69: #{tpu_custom_call.1} parent=39 // pred_check
          %p566 = pneg %p179
        $region70: #{tpu_custom_call.1} parent=39 // pred_check_branch
          %568 = sbr.rel (%p566) target = $region72
        $region71: #{tpu_custom_call.1} parent=39 // pred_region
          %s570 = ssub.s32 128, 128
          %571 = vsyncadd %s562, %s570
          %s572 = smul.addr %s28, 128
          %s573 = scalar_lea.hbm %s5, %s572
          %s575 = sshll.u32 %s565, 4
          %s576 = int_to_ptr.vmem [resolvable:$true] %s575
          %578 = dma.vmem_to_hbm [thread:$0]  %s576, 128, %s573, %s562
        $region72: #{tpu_custom_call.1} parent=39 // pred_fallthru
          _
      $region40: #{tpu_custom_call.1} parent=5 // pred_fallthru
        _
      %p579 = scmp.le.s32.totalorder 2, %s19
      // Predicated region
      $region73: #{tpu_custom_call.1} parent=5 // pred_check
        %p580 = pneg %p579
      $region74: #{tpu_custom_call.1} parent=5 // pred_check_branch
        %582 = sbr.rel (%p580) target = $region76
      $region75: #{tpu_custom_call.1} parent=5 // pred_region
        %s583 = ssub.s32 %s19, 2
        // Predicated region
        $region77: #{tpu_custom_call.1} parent=75 // pred_check
          %p584 = pneg %p185
        $region78: #{tpu_custom_call.1} parent=75 // pred_check_branch
          %586 = sbr.rel (%p584) target = $region80
        $region79: #{tpu_custom_call.1} parent=75 // pred_region
          %s587 = sand.u32 %s170, 1
          %s588 = scalar_lea.sflag [#allocation5], %s587
          %s589 = sand.u32 %s170, 1
          %s590 = smul.addr %s589, 8
          %s591 = scalar_lea.vmem [#allocation12], %s590
          %592 = dma.done %s588, 128
        $region80: #{tpu_custom_call.1} parent=75 // pred_fallthru
          _
      $region76: #{tpu_custom_call.1} parent=5 // pred_fallthru
        _
    $region6: #{tpu_custom_call.1} parent=1 // loop_footer
      %s23 = sadd.s32 1, %s19
    $region7: #{tpu_custom_call.1} parent=1 // loop_footer_branch
      %18 = sbr.rel target = $region3
    $region8: #{tpu_custom_call.1} parent=1 // loop_exit
      _
    %593 = vsyncpa [#allocation4], 1
    %s594 = scalar_lea.sflag [#allocation4], 1
    %595 = vsyncpa %s594, 1
    %596 = vsyncpa [#allocation7], 1
    %597 = vsyncpa [#allocation10], 1
    %598 = vsyncpa [#allocation5], 1
    %s599 = scalar_lea.sflag [#allocation5], 1
    %600 = vsyncpa %s599, 1

</llo_original>
